<compile_context>
chip_gen: v7x
topology: tpu7x:2x2x1
jax: 0.10.0
libtpu: 0.0.40
codegen_flags: <defaults>
</compile_context>

<pallas_src>
import math

import jax
import jax.numpy as jnp
from jax.experimental import pallas as pl
from jax.experimental.pallas import tpu as pltpu


def _round_up(x, m):
    return ((x + m - 1) // m) * m


# ----------------------------------------------------------------------------
# Kernels
# ----------------------------------------------------------------------------
def _make_fused_kernel(use_activation, output_activation):
    """Fused 5-layer MLP kernel. Layers 1-4 on the MXU (bf16 operands, f32
    accumulation), final (K,1) projection as a VPU multiply + lane reduce."""

    def kernel(x_ref,
               w1_ref, b1_ref, w2_ref, b2_ref, w3_ref, b3_ref, w4_ref, b4_ref,
               w5_ref, b5_ref, o_ref):
        def layer(h_lo, w_ref, b_ref):
            y = jnp.dot(h_lo, w_ref[...], preferred_element_type=jnp.float32)
            y = y + b_ref[...]                      # (1, out) broadcasts over rows
            if use_activation:
                y = jnp.maximum(y, 0.0)             # nn.ReLU
            return y                                # f32
            # nn.Dropout -> identity at inference.

        h = layer(x_ref[...].astype(jnp.bfloat16), w1_ref, b1_ref)
        h = layer(h.astype(jnp.bfloat16), w2_ref, b2_ref)
        h = layer(h.astype(jnp.bfloat16), w3_ref, b3_ref)
        h = layer(h.astype(jnp.bfloat16), w4_ref, b4_ref)
        # Final Linear(K, 1): VPU multiply + XLU lane reduce (frees the MXU,
        # avoids a lane-sparse N=1 result tile).  Kept in f32.
        y = jnp.sum(h * w5_ref[...], axis=-1, keepdims=True) + b5_ref[...]
        if output_activation == "sigmoid":
            y = jax.nn.sigmoid(y) * 9.0 + 1.0       # * (10 - 1) + 1
        o_ref[...] = y.astype(o_ref.dtype)

    return kernel


def _make_collapsed_kernel(output_activation):
    """use_activation=False path: the whole MLP is one affine map, collapsed
    offline to a single (1, F) row and scalar bias -> one matvec per row."""

    def kernel(x_ref, w_ref, b_ref, o_ref):
        h = x_ref[...].astype(jnp.float32)
        y = jnp.sum(h * w_ref[...], axis=-1, keepdims=True) + b_ref[...]
        if output_activation == "sigmoid":
            y = jax.nn.sigmoid(y) * 9.0 + 1.0
        o_ref[...] = y.astype(o_ref.dtype)

    return kernel


# ----------------------------------------------------------------------------
# Parameter preparation
# ----------------------------------------------------------------------------
def _collapse_affine(params):
    """Fold 5 Linear layers (no activation between them) into one affine map.
    Returns (w_row (1, F) f32, b (1, 1) f32)."""
    w, b = params[0]
    w = w.astype(jnp.float32)
    b = b.astype(jnp.float32).reshape(1, -1)
    for wi, bi in params[1:]:
        wi = wi.astype(jnp.float32)
        bi = bi.astype(jnp.float32).reshape(1, -1)
        b = b @ wi + bi
        w = w @ wi
    return w.T, b.reshape(1, 1)                     # (1, F), (1, 1)


def _prepare_fused(params, *, pad_to=128, matmul_dtype=jnp.bfloat16):
    """Pad hidden widths to multiples of `pad_to` (lane-dense intermediates;
    zero padding is exact) and pre-cast layer-1..4 weights to bf16.  The final
    (K, 1) weight is stored as an f32 (1, K) row for the VPU reduction."""
    n = len(params)
    flat = []
    prev_pad = params[0][0].shape[0]                # input feature dim (unpadded)
    for i, (w, b) in enumerate(params):
        d_in, d_out = w.shape
        in_pad = prev_pad
        if i < n - 1:
            out_pad = _round_up(d_out, pad_to)
            w_p = jnp.zeros((in_pad, out_pad), jnp.float32)
            w_p = w_p.at[:d_in, :d_out].set(w.astype(jnp.float32))
            b_p = jnp.zeros((1, out_pad), jnp.float32)
            b_p = b_p.at[:, :d_out].set(b.astype(jnp.float32))
            flat.append(w_p.astype(matmul_dtype))
            flat.append(b_p)
            prev_pad = out_pad
        else:
            w_row = jnp.zeros((1, in_pad), jnp.float32)
            w_row = w_row.at[:, :d_in].set(w.astype(jnp.float32)[:, 0])
            flat.append(w_row)
            flat.append(b.astype(jnp.float32).reshape(1, 1))
    return flat


# ----------------------------------------------------------------------------
# Forward wrapper
# ----------------------------------------------------------------------------
def aesthetic_scorer_forward(x, params, *, use_activation=False,
                             output_activation=None, tile_b=256,
                             pad_to=128, collapse_linear=True,
                             matmul_dtype=jnp.bfloat16):
    """params: list of 5 (W, b) pairs, W shaped (in, out), b shaped (out,)."""
    B, F = x.shape

    # ---- batch tiling (handles ragged B by zero-padding rows) ---------------
    tile_eff = int(min(_round_up(max(tile_b, 8), 8), _round_up(B, 8)))
    if B >= 16 and _round_up(B, tile_eff) == tile_eff:
        # Keep >= 2 grid steps so dimension_semantics=("parallel",) can shard
        # across both v7x TensorCores (no cost on 1-TC v5e/v6e).
        tile_eff = _round_up(-(-B // 2), 8)
    B_pad = _round_up(B, tile_eff)
    grid = B_pad // tile_eff
    if B_pad != B:
        x = jnp.pad(x, ((0, B_pad - B), (0, 0)))

    # ---- pick kernel + parameter layout --------------------------------------
    collapsed = collapse_linear and not use_activation
    if collapsed:
        w_row, b_all = _collapse_affine(params)
        flat = [w_row, b_all]
        kernel = _make_collapsed_kernel(output_activation)
    else:
        flat = _prepare_fused(params, pad_to=pad_to, matmul_dtype=matmul_dtype)
        kernel = _make_fused_kernel(use_activation, output_activation)

    # ---- specs ---------------------------------------------------------------
    in_specs = [pl.BlockSpec((tile_eff, F), lambda i: (i, 0))]
    for p in flat:
        in_specs.append(pl.BlockSpec(p.shape, lambda i: (0, 0)))
    out_spec = pl.BlockSpec((tile_eff, 1), lambda i: (i, 0))

    # ---- cost estimate + VMEM budget -----------------------------------------
    flops = sum(2 * B_pad * int(p.size) for p in flat[0::2])
    transc = B_pad if output_activation == "sigmoid" else 0
    bytes_acc = (x.size * x.dtype.itemsize
                 + sum(int(p.size) * p.dtype.itemsize for p in flat)
                 + B_pad * 4)
    vmem_est = 2 * tile_eff * F * x.dtype.itemsize                 # x (double-buffered)
    vmem_est += sum(2 * int(p.size) * p.dtype.itemsize for p in flat)
    vmem_est += 2 * tile_eff * 4                                    # output
    vmem_limit = min(64 * 1024 * 1024,
                     max(32 * 1024 * 1024, int(1.5 * vmem_est)))

    out = pl.pallas_call(
        kernel,
        out_shape=jax.ShapeDtypeStruct((B_pad, 1), jnp.float32),
        grid=(grid,),
        in_specs=in_specs,
        out_specs=out_spec,
        compiler_params=pltpu.CompilerParams(
            dimension_semantics=("parallel",),
            vmem_limit_bytes=vmem_limit),
        cost_estimate=pl.CostEstimate(flops=int(flops),
                                      transcendentals=int(transc),
                                      bytes_accessed=int(bytes_acc)),
    )(x, *flat)
    return out[:B] if B_pad != B else out


# ----------------------------------------------------------------------------
# Init + reference (mirror the PyTorch module)
# ----------------------------------------------------------------------------
def init_params(key, input_size, hidden_dim, reduce_dims=False):
    """PyTorch-style uniform(+-1/sqrt(fan_in)) init; W stored as (in, out)."""
    div = (1, 2, 4, 8) if reduce_dims else (1, 1, 1, 1)
    dims = [input_size,
            hidden_dim,
            round(hidden_dim / div[1]),
            round(hidden_dim / div[2]),
            round(hidden_dim / div[3]),
            1]
    params = []
    for d_in, d_out in zip(dims[:-1], dims[1:]):
        key, kw, kb = jax.random.split(key, 3)
        bound = 1.0 / math.sqrt(d_in)
        w = jax.random.uniform(kw, (d_in, d_out), jnp.float32, -bound, bound)
        b = jax.random.uniform(kb, (d_out,), jnp.float32, -bound, bound)
        params.append((w, b))
    return params


def reference_forward(x, params, use_activation=False, output_activation=None,
                      matmul_dtype=None):
    """Pure-JAX reference.  matmul_dtype=bfloat16 mirrors the kernel's
    mixed-precision matmuls (operands bf16, accumulation f32)."""
    h = x.astype(jnp.float32)
    n = len(params)
    for i, (w, b) in enumerate(params):
        if matmul_dtype is not None and i < n - 1:
            h = jnp.dot(h.astype(matmul_dtype), w.astype(matmul_dtype),
                        preferred_element_type=jnp.float32) + b
        else:
            h = jnp.dot(h, w.astype(jnp.float32),
                        preferred_element_type=jnp.float32) + b
        if use_activation and i < n - 1:
            h = jnp.maximum(h, 0.0)
    if output_activation == "sigmoid":
        h = jax.nn.sigmoid(h) * 9.0 + 1.0
    return h


if __name__ == "__main__":
    key = jax.random.PRNGKey(0)
    B, INPUT_SIZE, HIDDEN = 8, 32, 32

    # --- Path 1: module defaults (use_activation=False, no output activation)
    #     -> MLP collapses to a single affine map; kernel is one matvec/row.
    key, kx, kp = jax.random.split(key, 3)
    x = jax.random.normal(kx, (B, INPUT_SIZE), jnp.float32)
    params = init_params(kp, INPUT_SIZE, HIDDEN, reduce_dims=False)
    out = aesthetic_scorer_forward(x, params, use_activation=False,
                                   output_activation=None, tile_b=256)
    out = jax.block_until_ready(out)
    ref = reference_forward(x, params, False, None)
    assert out.shape == (B, 1)
    assert jnp.allclose(out, ref, atol=1e-3, rtol=1e-3)

    # Ragged batch (B=5) through the same path (padded + sliced).
    out5 = jax.block_until_ready(
        aesthetic_scorer_forward(x[:5], params, use_activation=False,
                                 output_activation=None, tile_b=256))
    assert out5.shape == (5, 1)
    assert jnp.allclose(out5, ref[:5], atol=1e-3, rtol=1e-3)

    # --- Path 2: use_activation=True + sigmoid output, reduce_dims=True
    #     -> fused 5-layer bf16 kernel with lane padding of hidden widths.
    key, kx2, kp2 = jax.random.split(key, 3)
    x2 = jax.random.normal(kx2, (B, INPUT_SIZE), jnp.float32)
    params2 = init_params(kp2, INPUT_SIZE, HIDDEN, reduce_dims=True)
    out2 = aesthetic_scorer_forward(x2, params2, use_activation=True,
                                    output_activation="sigmoid", tile_b=256)
    out2 = jax.block_until_ready(out2)
    ref2_matched = reference_forward(x2, params2, True, "sigmoid",
                                     matmul_dtype=jnp.bfloat16)
    ref2_f32 = reference_forward(x2, params2, True, "sigmoid")
    assert out2.shape == (B, 1)
    assert jnp.allclose(out2, ref2_matched, atol=1e-2, rtol=1e-2)
    assert jnp.allclose(out2, ref2_f32, atol=2e-1, rtol=2e-1)

    print("KERNEL_OK")
</pallas_src>

<mosaic_0001>
module attributes {stable_mosaic.version = 11 : i64} {
  func.func @kernel(%arg0: i32, %arg1: memref<8x32xf32, #tpu.memory_space<vmem>>, %arg2: memref<1x32xf32, #tpu.memory_space<vmem>>, %arg3: memref<1x1xf32, #tpu.memory_space<vmem>>, %arg4: memref<8x1xf32, #tpu.memory_space<vmem>>) attributes {dimension_semantics = [#tpu.dimension_semantics<parallel>], iteration_bounds = array<i64: 1>, scalar_prefetch = 0 : i64, scratch_operands = 0 : i64, tpu.core_type = #tpu.core_type<tc>, window_params = [{transform_indices = @transform_0, window_bounds = array<i64: 8, 32>}, {pipeline_mode = #tpu.pipeline_mode<synchronous>, transform_indices = @transform_1, window_bounds = array<i64: 1, 32>}, {pipeline_mode = #tpu.pipeline_mode<synchronous>, transform_indices = @transform_2, window_bounds = array<i64: 1, 1>}, {transform_indices = @transform_3, window_bounds = array<i64: 8, 1>}]} {
    %c0 = arith.constant 0 : index
    %c0_0 = arith.constant 0 : index
    %0 = vector.load %arg1[%c0, %c0_0] : memref<8x32xf32, #tpu.memory_space<vmem>>, vector<8x32xf32>
    %c0_1 = arith.constant 0 : index
    %c0_2 = arith.constant 0 : index
    %1 = vector.load %arg2[%c0_1, %c0_2] : memref<1x32xf32, #tpu.memory_space<vmem>>, vector<1x32xf32>
    %2 = vector.broadcast %1 : vector<1x32xf32> to vector<8x32xf32>
    %3 = arith.mulf %0, %2 : vector<8x32xf32>
    %cst = arith.constant dense<0.000000e+00> : vector<8xf32>
    %4 = vector.multi_reduction <add>, %3, %cst [1] : vector<8x32xf32> to vector<8xf32>
    %5 = vector.shape_cast %4 : vector<8xf32> to vector<8x1xf32>
    %c0_3 = arith.constant 0 : index
    %c0_4 = arith.constant 0 : index
    %6 = vector.load %arg3[%c0_3, %c0_4] : memref<1x1xf32, #tpu.memory_space<vmem>>, vector<1x1xf32>
    %7 = vector.broadcast %6 : vector<1x1xf32> to vector<8x1xf32>
    %8 = arith.addf %5, %7 : vector<8x1xf32>
    %c0_5 = arith.constant 0 : index
    %c0_6 = arith.constant 0 : index
    %9 = vector.load %arg4[%c0_5, %c0_6] : memref<8x1xf32, #tpu.memory_space<vmem>>, vector<8x1xf32>
    tpu.vector_store %arg4[%c0_5, %c0_6], %8 {strides = array<i32>} : memref<8x1xf32, #tpu.memory_space<vmem>>, vector<8x1xf32>,
    return
  }
  func.func @transform_0(%arg0: i32) -> (i32, i32) {
    %c0_i32 = arith.constant 0 : i32
    %c0_i32_0 = arith.constant 0 : i32
    return %arg0, %c0_i32 : i32, i32
  }
  func.func @transform_1(%arg0: i32) -> (i32, i32) {
    %c0_i32 = arith.constant 0 : i32
    %c0_i32_0 = arith.constant 0 : i32
    %c0_i32_1 = arith.constant 0 : i32
    return %c0_i32, %c0_i32_0 : i32, i32
  }
  func.func @transform_2(%arg0: i32) -> (i32, i32) {
    %c0_i32 = arith.constant 0 : i32
    %c0_i32_0 = arith.constant 0 : i32
    %c0_i32_1 = arith.constant 0 : i32
    return %c0_i32, %c0_i32_0 : i32, i32
  }
  func.func @transform_3(%arg0: i32) -> (i32, i32) {
    %c0_i32 = arith.constant 0 : i32
    %c0_i32_0 = arith.constant 0 : i32
    return %arg0, %c0_i32 : i32, i32
  }
}

</mosaic_0001>

<llo_original>
// kernel: tpu_custom_call.1
$region0: #{tpu_custom_call.1}
  #allocation0 [shape = 'u32[]', space=smem, size = 0x4, offset = 0x4, fixed_abs, tag = 'smem constant byte address 0x4 - core index']
  #allocation1 [shape = 'u32[144,128]{1,0:T(1,128)}', space=vmem, size = 0x12000, scoped, tag = 'internal scratch']
  #allocation2 [shape = 'f32[1,1]{1,0:T(1,128)S(1)}', space=vmem, size = 0x200, scoped, tag = 'scoped memory for tpu_custom_call.1']
  %s0 = inlined_call_operand.hbm [shape: f32[8,32], index: 0, kind: input, shape index: {}]
  %s1 = inlined_call_operand.vmem [shape: f32[1,32], index: 1, kind: input, shape index: {}]
  %s2 = inlined_call_operand.<no memory space> [shape: f32[1,1], index: 2, kind: input, shape index: {}]
  %s3 = inlined_call_operand.vmem [shape: f32[8,1], index: 3, kind: output, shape index: {}]
  %s4 = sld [smem:[#allocation0]]
  $region26: #{tpu_custom_call.1} parent=0
    _
  %s6 = ssub.s32 1, %s4
  %s7 = scalar_select 0, %s6, %s4
  %v8 = vstv %s2
  %9 = vst [vmem:[#allocation2] sm:$0x1] %v8
  $region1: #{tpu_custom_call.1} parent=0
    #allocation3 [shape = 'u8[4096]{0}', space=vmem, size = 0x1000, scoped, tag = 'input window, operand 0, single buffered']
    #allocation4 [shape = 's32[1]{0}', space=sflag, size = 0x4, scoped, tag = 'scoped memory for tpu_custom_call.1']
    %10 = vsyncpa [#allocation4], 0
    // Predicated region
    $region2: #{tpu_custom_call.1} parent=1 // pred_check
      _
    $region3: #{tpu_custom_call.1} parent=1 // pred_check_branch
      %12 = sbr.rel (0) target = $region5
    $region4: #{tpu_custom_call.1} parent=1 // pred_region
      %s14 = ssub.s32 128, 128
      %15 = vsyncadd [#allocation4], %s14
      %s17 = sshll.u32 [#allocation3], 4
      %s18 = int_to_ptr.vmem [resolvable:$true] %s17
      %20 = dma.hbm_to_vmem [thread:$0]  %s0, 128, %s18, [#allocation4]
    $region5: #{tpu_custom_call.1} parent=1 // pred_fallthru
      _
    // Predicated region
    $region6: #{tpu_custom_call.1} parent=1 // pred_check
      _
    $region7: #{tpu_custom_call.1} parent=1 // pred_check_branch
      %22 = sbr.rel (0) target = $region9
    $region8: #{tpu_custom_call.1} parent=1 // pred_region
      _
    $region9: #{tpu_custom_call.1} parent=1 // pred_fallthru
      _
    // Predicated region
    $region10: #{tpu_custom_call.1} parent=1 // pred_check
      _
    $region11: #{tpu_custom_call.1} parent=1 // pred_check_branch
      %24 = sbr.rel (0) target = $region13
    $region12: #{tpu_custom_call.1} parent=1 // pred_region
      _
    $region13: #{tpu_custom_call.1} parent=1 // pred_fallthru
      _
    // Predicated region
    $region14: #{tpu_custom_call.1} parent=1 // pred_check
      _
    $region15: #{tpu_custom_call.1} parent=1 // pred_check_branch
      %26 = sbr.rel (0) target = $region17
    $region16: #{tpu_custom_call.1} parent=1 // pred_region
      %27 = dma.done [#allocation4], 128
    $region17: #{tpu_custom_call.1} parent=1 // pred_fallthru
      _
    %v28 = vld [vmem:[#allocation3] sm:$0xff]
    %v29 = vld [vmem:[%s1] sm:$0x1]
    %v31 = vlaneseq
    %v32 = vshrl.u32 %v31, 7
    %v33 = vsub.s32 0, %v32
    %v34 = vrot.slane %v29, %v33
    %v36 = vmul.f32 %v28, %v34
    %vm37 = vcmask 261120
    %v38 = vsel %vm37, %v36, 0.0
    %39 = vadd.xlane.f32.xlu0 %v38
    %v40 = vpop.xlane.xlu0 %39
    %v41 = vld [vmem:[#allocation2] sm:$0x1]
    %v43 = vlaneseq
    %v44 = vshrl.u32 %v43, 7
    %v45 = vsub.s32 0, %v44
    %v46 = vrot.slane %v41, %v45
    %v48 = vadd.f32 %v40, %v46
    %vm49 = vcmask 7168
    %50 = vst.msk [vmem:[%s3] sm:$0xff] %vm49, %v48
    // Predicated region
    $region18: #{tpu_custom_call.1} parent=1 // pred_check
      _
    $region19: #{tpu_custom_call.1} parent=1 // pred_check_branch
      %52 = sbr.rel (0) target = $region21
    $region20: #{tpu_custom_call.1} parent=1 // pred_region
      _
    $region21: #{tpu_custom_call.1} parent=1 // pred_fallthru
      _
    // Predicated region
    $region22: #{tpu_custom_call.1} parent=1 // pred_check
      _
    $region23: #{tpu_custom_call.1} parent=1 // pred_check_branch
      %54 = sbr.rel (0) target = $region25
    $region24: #{tpu_custom_call.1} parent=1 // pred_region
      _
    $region25: #{tpu_custom_call.1} parent=1 // pred_fallthru
      _
    %55 = vsyncpa [#allocation4], 1

</llo_original>
